<compile_context>
chip_gen: v5e
topology: v5e:2x2
jax: 0.10.0
libtpu: 0.0.40
codegen_flags: <defaults>
</compile_context>

<pallas_src>
import functools

import jax
import jax.numpy as jnp
from jax.experimental import pallas as pl
from jax.experimental.pallas import tpu as pltpu


def _deconv_kernel(x_ref, w_ref, b_ref, o_ref, xpad_ref, col_ref, *, W):
    # x_ref:    (B, C_in, H*W)       unpadded flattened feature maps
    # w_ref:    (C_out, 9*C_in)      im2col weight (columns: tap-major, ci-minor)
    # b_ref:    (C_out, 1)           bias
    # o_ref:    (B, C_out, H*W)      output (lane-dense, H*W multiple of 128)
    # xpad_ref: (B, C_in, padw)      VMEM scratch: flattened axis + zero halo
    # col_ref:  (9*C_in, B*H*W)      VMEM im2col scratch
    B, C_in, HW = x_ref.shape
    pad = W + 1

    # Zero the padded scratch once; only the halo matters (middle is
    # overwritten below).  This replaces the old HBM jnp.pad round trip.
    xpad_ref[...] = jnp.zeros_like(xpad_ref)

    # Column index of every flattened spatial position (dx boundary masks).
    col = jax.lax.broadcasted_iota(jnp.int32, (1, HW), 1) % W

    for b in range(B):                      # static, tiny B
        xpad_ref[b, :, pl.ds(pad, HW)] = x_ref[b]
        for t in range(9):
            dy = t // 3 - 1
            dx = t % 3 - 1
            start = pad + dy * W + dx       # static, always in-bounds
            xs = xpad_ref[b, :, pl.ds(start, HW)]        # (C_in, HW)
            # dy over/underflow lands in the zero halo automatically; only the
            # within-row wrap of the dx = +-1 taps needs explicit masking.
            if dx == -1:
                xs = jnp.where(col > 0, xs, 0)
            elif dx == 1:
                xs = jnp.where(col < W - 1, xs, 0)
            col_ref[pl.ds(t * C_in, C_in), pl.ds(b * HW, HW)] = xs

    # One im2col matmul (K = 9*C_in, N = B*H*W).  Native-dtype operands,
    # f32 accumulation on the MXU.
    acc = jnp.dot(w_ref[...], col_ref[...], preferred_element_type=jnp.float32)
    acc = acc + b_ref[...].astype(jnp.float32)

    for b in range(B):
        # b*HW is a multiple of 128 -> lane-aligned, unmasked output stores.
        o_ref[b] = acc[:, b * HW:(b + 1) * HW].astype(o_ref.dtype)


def _combined_weight(w_cd_raw, b_cd, w_hd_raw, b_hd):
    """Reproduce Conv2d_cd.get_weight() + Conv2d_hd.get_weight() and sum them.

    w_cd_raw: (C_out, C_in, 3, 3)  conv1_1.conv.weight
    w_hd_raw: (C_out, C_in, 3)     conv1_2.conv.weight (Conv1d)
    Returns w: (C_out, C_in, 9) flattened 3x3 weight, b: (C_out,)
    """
    co, ci = w_cd_raw.shape[:2]
    w_cd = w_cd_raw.reshape(co, ci, 9)
    w_cd = w_cd.at[:, :, 4].set(w_cd[:, :, 4] - w_cd.sum(axis=2))

    w_hd = jnp.zeros((co, ci, 9), w_cd_raw.dtype)
    w_hd = w_hd.at[:, :, jnp.array([0, 3, 6])].set(w_hd_raw)
    w_hd = w_hd.at[:, :, jnp.array([2, 5, 8])].set(-w_hd_raw)

    return w_cd + w_hd, b_cd + b_hd


def deconv_pallas(x, w_cd_raw, b_cd, w_hd_raw, b_hd):
    """DEConv forward.  x: (B, C, H, W) NCHW."""
    B, C, H, W = x.shape
    HW = H * W
    pad = W + 1
    padw = pl.cdiv(HW + 2 * pad, 128) * 128   # padded lane extent, 128-aligned

    w_flat, b = _combined_weight(w_cd_raw, b_cd, w_hd_raw, b_hd)  # (C,C,9),(C,)
    # im2col weight: column index = tap*C_in + ci  (matches col_ref row order)
    w_im2col = jnp.transpose(w_flat, (0, 2, 1)).reshape(C, 9 * C)
    b2d = b.reshape(C, 1)

    # Metadata-only reshape; no HBM copies in the wrapper.
    x_flat = x.reshape(B, C, HW)

    x_item = jnp.dtype(x.dtype).itemsize
    w_item = jnp.dtype(w_im2col.dtype).itemsize
    cost = pl.CostEstimate(
        flops=2 * B * HW * C * (9 * C),
        transcendentals=0,
        bytes_accessed=(x_flat.size + B * C * HW) * x_item
        + (w_im2col.size + b2d.size) * w_item,
    )

    out_flat = pl.pallas_call(
        functools.partial(_deconv_kernel, W=W),
        out_shape=jax.ShapeDtypeStruct((B, C, HW), x.dtype),
        grid_spec=pltpu.PrefetchScalarGridSpec(
            num_scalar_prefetch=0,
            grid=(1,),
            in_specs=[
                pl.BlockSpec((B, C, HW), lambda i: (0, 0, 0)),
                pl.BlockSpec((C, 9 * C), lambda i: (0, 0)),
                pl.BlockSpec((C, 1), lambda i: (0, 0)),
            ],
            out_specs=pl.BlockSpec((B, C, HW), lambda i: (0, 0, 0)),
            scratch_shapes=[
                pltpu.VMEM((B, C, padw), x.dtype),       # in-VMEM padded copy
                pltpu.VMEM((9 * C, B * HW), x.dtype),    # im2col scratch
            ],
        ),
        compiler_params=pltpu.CompilerParams(
            dimension_semantics=("arbitrary",)),
        cost_estimate=cost,
    )(x_flat, w_im2col, b2d)

    return out_flat.reshape(B, C, H, W)


def deconv_ref(x, w_cd_raw, b_cd, w_hd_raw, b_hd):
    """Plain-JAX reference matching DEConv.forward (conv2d with combined weight)."""
    w_flat, b = _combined_weight(x_dtype_cast(w_cd_raw), b_cd, w_hd_raw, b_hd)
    co, ci = w_flat.shape[:2]
    w = w_flat.reshape(co, ci, 3, 3)
    out = jax.lax.conv_general_dilated(
        x, w, window_strides=(1, 1), padding=((1, 1), (1, 1)),
        dimension_numbers=("NCHW", "OIHW", "NCHW"))
    return out + b[None, :, None, None]


def x_dtype_cast(w):
    return w


if __name__ == "__main__":
    B, C, H, W = 2, 4, 16, 16   # DEConv(dim=4)

    key = jax.random.PRNGKey(0)
    kx, k1, kb1, k2, kb2 = jax.random.split(key, 5)

    x = jax.random.normal(kx, (B, C, H, W), dtype=jnp.float32)
    # conv1_1 (Conv2d_cd): nn.Conv2d(dim, dim, 3, bias=True) weight / bias
    w_cd_raw = jax.random.normal(k1, (C, C, 3, 3), dtype=jnp.float32) * 0.2
    b_cd = jax.random.normal(kb1, (C,), dtype=jnp.float32) * 0.1
    # conv1_2 (Conv2d_hd): nn.Conv1d(dim, dim, 3, bias=True) weight / bias
    w_hd_raw = jax.random.normal(k2, (C, C, 3), dtype=jnp.float32) * 0.2
    b_hd = jax.random.normal(kb2, (C,), dtype=jnp.float32) * 0.1

    out = deconv_pallas(x, w_cd_raw, b_cd, w_hd_raw, b_hd)
    out = jax.block_until_ready(out)

    ref = deconv_ref(x, w_cd_raw, b_cd, w_hd_raw, b_hd)
    assert out.shape == (B, C, H, W)
    assert jnp.allclose(out, ref, atol=1e-4, rtol=1e-4), "mismatch vs reference"

    print("KERNEL_OK")
</pallas_src>

<mosaic_0001>
module attributes {stable_mosaic.version = 11 : i64} {
  func.func @_deconv_kernel(%arg0: i32, %arg1: memref<2x4x256xf32, #tpu.memory_space<vmem>>, %arg2: memref<4x36xf32, #tpu.memory_space<vmem>>, %arg3: memref<4x1xf32, #tpu.memory_space<vmem>>, %arg4: memref<2x4x256xf32, #tpu.memory_space<vmem>>, %arg5: memref<2x4x384xf32, #tpu.memory_space<vmem>>, %arg6: memref<36x512xf32, #tpu.memory_space<vmem>>) attributes {dimension_semantics = [#tpu.dimension_semantics<arbitrary>], iteration_bounds = array<i64: 1>, scalar_prefetch = 0 : i64, scratch_operands = 2 : i64, tpu.core_type = #tpu.core_type<tc>, window_params = [{pipeline_mode = #tpu.pipeline_mode<synchronous>, transform_indices = @transform_0, window_bounds = array<i64: 2, 4, 256>}, {pipeline_mode = #tpu.pipeline_mode<synchronous>, transform_indices = @transform_1, window_bounds = array<i64: 4, 36>}, {pipeline_mode = #tpu.pipeline_mode<synchronous>, transform_indices = @transform_2, window_bounds = array<i64: 4, 1>}, {pipeline_mode = #tpu.pipeline_mode<synchronous>, transform_indices = @transform_3, window_bounds = array<i64: 2, 4, 256>}]} {
    %cst = arith.constant 0.000000e+00 : f32
    %0 = vector.broadcast %cst : f32 to vector<2x4x384xf32>
    %c0 = arith.constant 0 : index
    %c0_0 = arith.constant 0 : index
    %c0_1 = arith.constant 0 : index
    %1 = vector.load %arg5[%c0, %c0_0, %c0_1] : memref<2x4x384xf32, #tpu.memory_space<vmem>>, vector<2x4x384xf32>
    tpu.vector_store %arg5[%c0, %c0_0, %c0_1], %0 {strides = array<i32>} : memref<2x4x384xf32, #tpu.memory_space<vmem>>, vector<2x4x384xf32>,
    %2 = tpu.iota {dimensions = array<i32: 1>} : vector<1x256xi32>
    %c16_i32 = arith.constant 16 : i32
    %c0_i32 = arith.constant 0 : i32
    %3 = arith.cmpi eq, %c16_i32, %c0_i32 : i32
    %c1_i32 = arith.constant 1 : i32
    %4 = arith.select %3, %c1_i32, %c16_i32 : i32
    %5 = vector.broadcast %4 : i32 to vector<1x256xi32>
    %6 = arith.remsi %2, %5 : vector<1x256xi32>
    %c0_i32_2 = arith.constant 0 : i32
    %7 = vector.broadcast %c0_i32_2 : i32 to vector<1x256xi32>
    %8 = arith.cmpi ne, %6, %7 : vector<1x256xi32>
    %c0_i32_3 = arith.constant 0 : i32
    %9 = vector.broadcast %c0_i32_3 : i32 to vector<1x256xi32>
    %10 = arith.cmpi slt, %6, %9 : vector<1x256xi32>
    %c0_i32_4 = arith.constant 0 : i32
    %11 = arith.cmpi slt, %4, %c0_i32_4 : i32
    %12 = vector.broadcast %11 : i1 to vector<1x256xi1>
    %13 = vector.broadcast %12 : vector<1x256xi1> to vector<1x256xi1>
    %14 = arith.xori %10, %13 : vector<1x256xi1>
    %15 = arith.andi %14, %8 : vector<1x256xi1>
    %16 = vector.broadcast %4 : i32 to vector<1x256xi32>
    %17 = arith.addi %6, %16 : vector<1x256xi32>
    %18 = arith.select %15, %17, %6 : vector<1x256xi1>, vector<1x256xi32>
    %c0_5 = arith.constant 0 : index
    %c0_6 = arith.constant 0 : index
    %c0_7 = arith.constant 0 : index
    %19 = vector.load %arg1[%c0_5, %c0_6, %c0_7] : memref<2x4x256xf32, #tpu.memory_space<vmem>>, vector<1x4x256xf32>
    %20 = vector.shape_cast %19 : vector<1x4x256xf32> to vector<4x256xf32>
    %c0_8 = arith.constant 0 : index
    %c0_9 = arith.constant 0 : index
    %c17 = arith.constant 17 : index
    %21 = vector.load %arg5[%c0_8, %c0_9, %c17] : memref<2x4x384xf32, #tpu.memory_space<vmem>>, vector<1x4x256xf32>
    %22 = vector.shape_cast %21 : vector<1x4x256xf32> to vector<4x256xf32>
    %23 = vector.shape_cast %20 : vector<4x256xf32> to vector<1x4x256xf32>
    tpu.vector_store %arg5[%c0_8, %c0_9, %c17], %23 {strides = array<i32>} : memref<2x4x384xf32, #tpu.memory_space<vmem>>, vector<1x4x256xf32>,
    %c0_10 = arith.constant 0 : index
    %c0_11 = arith.constant 0 : index
    %c0_12 = arith.constant 0 : index
    %24 = vector.load %arg5[%c0_10, %c0_11, %c0_12] : memref<2x4x384xf32, #tpu.memory_space<vmem>>, vector<1x4x256xf32>
    %25 = vector.shape_cast %24 : vector<1x4x256xf32> to vector<4x256xf32>
    %c0_i32_13 = arith.constant 0 : i32
    %26 = vector.broadcast %c0_i32_13 : i32 to vector<1x256xi32>
    %27 = arith.cmpi sgt, %18, %26 : vector<1x256xi32>
    %c0_i32_14 = arith.constant 0 : i32
    %28 = arith.sitofp %c0_i32_14 : i32 to f32
    %29 = vector.shape_cast %27 : vector<1x256xi1> to vector<1x256xi1>
    %30 = vector.broadcast %29 : vector<1x256xi1> to vector<4x256xi1>
    %31 = vector.broadcast %28 : f32 to vector<4x256xf32>
    %32 = arith.select %30, %25, %31 : vector<4x256xi1>, vector<4x256xf32>
    %c0_15 = arith.constant 0 : index
    %c0_16 = arith.constant 0 : index
    %33 = vector.load %arg6[%c0_15, %c0_16] : memref<36x512xf32, #tpu.memory_space<vmem>>, vector<4x256xf32>
    tpu.vector_store %arg6[%c0_15, %c0_16], %32 {strides = array<i32>} : memref<36x512xf32, #tpu.memory_space<vmem>>, vector<4x256xf32>,
    %c0_17 = arith.constant 0 : index
    %c0_18 = arith.constant 0 : index
    %c1 = arith.constant 1 : index
    %34 = vector.load %arg5[%c0_17, %c0_18, %c1] : memref<2x4x384xf32, #tpu.memory_space<vmem>>, vector<1x4x256xf32>
    %35 = vector.shape_cast %34 : vector<1x4x256xf32> to vector<4x256xf32>
    %c4 = arith.constant 4 : index
    %c0_19 = arith.constant 0 : index
    %36 = vector.load %arg6[%c4, %c0_19] : memref<36x512xf32, #tpu.memory_space<vmem>>, vector<4x256xf32>
    tpu.vector_store %arg6[%c4, %c0_19], %35 {strides = array<i32>} : memref<36x512xf32, #tpu.memory_space<vmem>>, vector<4x256xf32>,
    %c0_20 = arith.constant 0 : index
    %c0_21 = arith.constant 0 : index
    %c2 = arith.constant 2 : index
    %37 = vector.load %arg5[%c0_20, %c0_21, %c2] : memref<2x4x384xf32, #tpu.memory_space<vmem>>, vector<1x4x256xf32>
    %38 = vector.shape_cast %37 : vector<1x4x256xf32> to vector<4x256xf32>
    %c15_i32 = arith.constant 15 : i32
    %39 = vector.broadcast %c15_i32 : i32 to vector<1x256xi32>
    %40 = arith.cmpi slt, %18, %39 : vector<1x256xi32>
    %c0_i32_22 = arith.constant 0 : i32
    %41 = arith.sitofp %c0_i32_22 : i32 to f32
    %42 = vector.shape_cast %40 : vector<1x256xi1> to vector<1x256xi1>
    %43 = vector.broadcast %42 : vector<1x256xi1> to vector<4x256xi1>
    %44 = vector.broadcast %41 : f32 to vector<4x256xf32>
    %45 = arith.select %43, %38, %44 : vector<4x256xi1>, vector<4x256xf32>
    %c8 = arith.constant 8 : index
    %c0_23 = arith.constant 0 : index
    %46 = vector.load %arg6[%c8, %c0_23] : memref<36x512xf32, #tpu.memory_space<vmem>>, vector<4x256xf32>
    tpu.vector_store %arg6[%c8, %c0_23], %45 {strides = array<i32>} : memref<36x512xf32, #tpu.memory_space<vmem>>, vector<4x256xf32>,
    %c0_24 = arith.constant 0 : index
    %c0_25 = arith.constant 0 : index
    %c16 = arith.constant 16 : index
    %47 = vector.load %arg5[%c0_24, %c0_25, %c16] : memref<2x4x384xf32, #tpu.memory_space<vmem>>, vector<1x4x256xf32>
    %48 = vector.shape_cast %47 : vector<1x4x256xf32> to vector<4x256xf32>
    %c0_i32_26 = arith.constant 0 : i32
    %49 = vector.broadcast %c0_i32_26 : i32 to vector<1x256xi32>
    %50 = arith.cmpi sgt, %18, %49 : vector<1x256xi32>
    %c0_i32_27 = arith.constant 0 : i32
    %51 = arith.sitofp %c0_i32_27 : i32 to f32
    %52 = vector.shape_cast %50 : vector<1x256xi1> to vector<1x256xi1>
    %53 = vector.broadcast %52 : vector<1x256xi1> to vector<4x256xi1>
    %54 = vector.broadcast %51 : f32 to vector<4x256xf32>
    %55 = arith.select %53, %48, %54 : vector<4x256xi1>, vector<4x256xf32>
    %c12 = arith.constant 12 : index
    %c0_28 = arith.constant 0 : index
    %56 = vector.load %arg6[%c12, %c0_28] : memref<36x512xf32, #tpu.memory_space<vmem>>, vector<4x256xf32>
    tpu.vector_store %arg6[%c12, %c0_28], %55 {strides = array<i32>} : memref<36x512xf32, #tpu.memory_space<vmem>>, vector<4x256xf32>,
    %c0_29 = arith.constant 0 : index
    %c0_30 = arith.constant 0 : index
    %c17_31 = arith.constant 17 : index
    %57 = vector.load %arg5[%c0_29, %c0_30, %c17_31] : memref<2x4x384xf32, #tpu.memory_space<vmem>>, vector<1x4x256xf32>
    %58 = vector.shape_cast %57 : vector<1x4x256xf32> to vector<4x256xf32>
    %c16_32 = arith.constant 16 : index
    %c0_33 = arith.constant 0 : index
    %59 = vector.load %arg6[%c16_32, %c0_33] : memref<36x512xf32, #tpu.memory_space<vmem>>, vector<4x256xf32>
    tpu.vector_store %arg6[%c16_32, %c0_33], %58 {strides = array<i32>} : memref<36x512xf32, #tpu.memory_space<vmem>>, vector<4x256xf32>,
    %c0_34 = arith.constant 0 : index
    %c0_35 = arith.constant 0 : index
    %c18 = arith.constant 18 : index
    %60 = vector.load %arg5[%c0_34, %c0_35, %c18] : memref<2x4x384xf32, #tpu.memory_space<vmem>>, vector<1x4x256xf32>
    %61 = vector.shape_cast %60 : vector<1x4x256xf32> to vector<4x256xf32>
    %c15_i32_36 = arith.constant 15 : i32
    %62 = vector.broadcast %c15_i32_36 : i32 to vector<1x256xi32>
    %63 = arith.cmpi slt, %18, %62 : vector<1x256xi32>
    %c0_i32_37 = arith.constant 0 : i32
    %64 = arith.sitofp %c0_i32_37 : i32 to f32
    %65 = vector.shape_cast %63 : vector<1x256xi1> to vector<1x256xi1>
    %66 = vector.broadcast %65 : vector<1x256xi1> to vector<4x256xi1>
    %67 = vector.broadcast %64 : f32 to vector<4x256xf32>
    %68 = arith.select %66, %61, %67 : vector<4x256xi1>, vector<4x256xf32>
    %c20 = arith.constant 20 : index
    %c0_38 = arith.constant 0 : index
    %69 = vector.load %arg6[%c20, %c0_38] : memref<36x512xf32, #tpu.memory_space<vmem>>, vector<4x256xf32>
    tpu.vector_store %arg6[%c20, %c0_38], %68 {strides = array<i32>} : memref<36x512xf32, #tpu.memory_space<vmem>>, vector<4x256xf32>,
    %c0_39 = arith.constant 0 : index
    %c0_40 = arith.constant 0 : index
    %c32 = arith.constant 32 : index
    %70 = vector.load %arg5[%c0_39, %c0_40, %c32] : memref<2x4x384xf32, #tpu.memory_space<vmem>>, vector<1x4x256xf32>
    %71 = vector.shape_cast %70 : vector<1x4x256xf32> to vector<4x256xf32>
    %c0_i32_41 = arith.constant 0 : i32
    %72 = vector.broadcast %c0_i32_41 : i32 to vector<1x256xi32>
    %73 = arith.cmpi sgt, %18, %72 : vector<1x256xi32>
    %c0_i32_42 = arith.constant 0 : i32
    %74 = arith.sitofp %c0_i32_42 : i32 to f32
    %75 = vector.shape_cast %73 : vector<1x256xi1> to vector<1x256xi1>
    %76 = vector.broadcast %75 : vector<1x256xi1> to vector<4x256xi1>
    %77 = vector.broadcast %74 : f32 to vector<4x256xf32>
    %78 = arith.select %76, %71, %77 : vector<4x256xi1>, vector<4x256xf32>
    %c24 = arith.constant 24 : index
    %c0_43 = arith.constant 0 : index
    %79 = vector.load %arg6[%c24, %c0_43] : memref<36x512xf32, #tpu.memory_space<vmem>>, vector<4x256xf32>
    tpu.vector_store %arg6[%c24, %c0_43], %78 {strides = array<i32>} : memref<36x512xf32, #tpu.memory_space<vmem>>, vector<4x256xf32>,
    %c0_44 = arith.constant 0 : index
    %c0_45 = arith.constant 0 : index
    %c33 = arith.constant 33 : index
    %80 = vector.load %arg5[%c0_44, %c0_45, %c33] : memref<2x4x384xf32, #tpu.memory_space<vmem>>, vector<1x4x256xf32>
    %81 = vector.shape_cast %80 : vector<1x4x256xf32> to vector<4x256xf32>
    %c28 = arith.constant 28 : index
    %c0_46 = arith.constant 0 : index
    %82 = vector.load %arg6[%c28, %c0_46] : memref<36x512xf32, #tpu.memory_space<vmem>>, vector<4x256xf32>
    tpu.vector_store %arg6[%c28, %c0_46], %81 {strides = array<i32>} : memref<36x512xf32, #tpu.memory_space<vmem>>, vector<4x256xf32>,
    %c0_47 = arith.constant 0 : index
    %c0_48 = arith.constant 0 : index
    %c34 = arith.constant 34 : index
    %83 = vector.load %arg5[%c0_47, %c0_48, %c34] : memref<2x4x384xf32, #tpu.memory_space<vmem>>, vector<1x4x256xf32>
    %84 = vector.shape_cast %83 : vector<1x4x256xf32> to vector<4x256xf32>
    %c15_i32_49 = arith.constant 15 : i32
    %85 = vector.broadcast %c15_i32_49 : i32 to vector<1x256xi32>
    %86 = arith.cmpi slt, %18, %85 : vector<1x256xi32>
    %c0_i32_50 = arith.constant 0 : i32
    %87 = arith.sitofp %c0_i32_50 : i32 to f32
    %88 = vector.shape_cast %86 : vector<1x256xi1> to vector<1x256xi1>
    %89 = vector.broadcast %88 : vector<1x256xi1> to vector<4x256xi1>
    %90 = vector.broadcast %87 : f32 to vector<4x256xf32>
    %91 = arith.select %89, %84, %90 : vector<4x256xi1>, vector<4x256xf32>
    %c32_51 = arith.constant 32 : index
    %c0_52 = arith.constant 0 : index
    %92 = vector.load %arg6[%c32_51, %c0_52] : memref<36x512xf32, #tpu.memory_space<vmem>>, vector<4x256xf32>
    tpu.vector_store %arg6[%c32_51, %c0_52], %91 {strides = array<i32>} : memref<36x512xf32, #tpu.memory_space<vmem>>, vector<4x256xf32>,
    %c1_53 = arith.constant 1 : index
    %c0_54 = arith.constant 0 : index
    %c0_55 = arith.constant 0 : index
    %93 = vector.load %arg1[%c1_53, %c0_54, %c0_55] : memref<2x4x256xf32, #tpu.memory_space<vmem>>, vector<1x4x256xf32>
    %94 = vector.shape_cast %93 : vector<1x4x256xf32> to vector<4x256xf32>
    %c1_56 = arith.constant 1 : index
    %c0_57 = arith.constant 0 : index
    %c17_58 = arith.constant 17 : index
    %95 = vector.load %arg5[%c1_56, %c0_57, %c17_58] : memref<2x4x384xf32, #tpu.memory_space<vmem>>, vector<1x4x256xf32>
    %96 = vector.shape_cast %95 : vector<1x4x256xf32> to vector<4x256xf32>
    %97 = vector.shape_cast %94 : vector<4x256xf32> to vector<1x4x256xf32>
    tpu.vector_store %arg5[%c1_56, %c0_57, %c17_58], %97 {strides = array<i32>} : memref<2x4x384xf32, #tpu.memory_space<vmem>>, vector<1x4x256xf32>,
    %c1_59 = arith.constant 1 : index
    %c0_60 = arith.constant 0 : index
    %c0_61 = arith.constant 0 : index
    %98 = vector.load %arg5[%c1_59, %c0_60, %c0_61] : memref<2x4x384xf32, #tpu.memory_space<vmem>>, vector<1x4x256xf32>
    %99 = vector.shape_cast %98 : vector<1x4x256xf32> to vector<4x256xf32>
    %c0_i32_62 = arith.constant 0 : i32
    %100 = vector.broadcast %c0_i32_62 : i32 to vector<1x256xi32>
    %101 = arith.cmpi sgt, %18, %100 : vector<1x256xi32>
    %c0_i32_63 = arith.constant 0 : i32
    %102 = arith.sitofp %c0_i32_63 : i32 to f32
    %103 = vector.shape_cast %101 : vector<1x256xi1> to vector<1x256xi1>
    %104 = vector.broadcast %103 : vector<1x256xi1> to vector<4x256xi1>
    %105 = vector.broadcast %102 : f32 to vector<4x256xf32>
    %106 = arith.select %104, %99, %105 : vector<4x256xi1>, vector<4x256xf32>
    %c0_64 = arith.constant 0 : index
    %c256 = arith.constant 256 : index
    %107 = vector.load %arg6[%c0_64, %c256] : memref<36x512xf32, #tpu.memory_space<vmem>>, vector<4x256xf32>
    tpu.vector_store %arg6[%c0_64, %c256], %106 {strides = array<i32>} : memref<36x512xf32, #tpu.memory_space<vmem>>, vector<4x256xf32>,
    %c1_65 = arith.constant 1 : index
    %c0_66 = arith.constant 0 : index
    %c1_67 = arith.constant 1 : index
    %108 = vector.load %arg5[%c1_65, %c0_66, %c1_67] : memref<2x4x384xf32, #tpu.memory_space<vmem>>, vector<1x4x256xf32>
    %109 = vector.shape_cast %108 : vector<1x4x256xf32> to vector<4x256xf32>
    %c4_68 = arith.constant 4 : index
    %c256_69 = arith.constant 256 : index
    %110 = vector.load %arg6[%c4_68, %c256_69] : memref<36x512xf32, #tpu.memory_space<vmem>>, vector<4x256xf32>
    tpu.vector_store %arg6[%c4_68, %c256_69], %109 {strides = array<i32>} : memref<36x512xf32, #tpu.memory_space<vmem>>, vector<4x256xf32>,
    %c1_70 = arith.constant 1 : index
    %c0_71 = arith.constant 0 : index
    %c2_72 = arith.constant 2 : index
    %111 = vector.load %arg5[%c1_70, %c0_71, %c2_72] : memref<2x4x384xf32, #tpu.memory_space<vmem>>, vector<1x4x256xf32>
    %112 = vector.shape_cast %111 : vector<1x4x256xf32> to vector<4x256xf32>
    %c15_i32_73 = arith.constant 15 : i32
    %113 = vector.broadcast %c15_i32_73 : i32 to vector<1x256xi32>
    %114 = arith.cmpi slt, %18, %113 : vector<1x256xi32>
    %c0_i32_74 = arith.constant 0 : i32
    %115 = arith.sitofp %c0_i32_74 : i32 to f32
    %116 = vector.shape_cast %114 : vector<1x256xi1> to vector<1x256xi1>
    %117 = vector.broadcast %116 : vector<1x256xi1> to vector<4x256xi1>
    %118 = vector.broadcast %115 : f32 to vector<4x256xf32>
    %119 = arith.select %117, %112, %118 : vector<4x256xi1>, vector<4x256xf32>
    %c8_75 = arith.constant 8 : index
    %c256_76 = arith.constant 256 : index
    %120 = vector.load %arg6[%c8_75, %c256_76] : memref<36x512xf32, #tpu.memory_space<vmem>>, vector<4x256xf32>
    tpu.vector_store %arg6[%c8_75, %c256_76], %119 {strides = array<i32>} : memref<36x512xf32, #tpu.memory_space<vmem>>, vector<4x256xf32>,
    %c1_77 = arith.constant 1 : index
    %c0_78 = arith.constant 0 : index
    %c16_79 = arith.constant 16 : index
    %121 = vector.load %arg5[%c1_77, %c0_78, %c16_79] : memref<2x4x384xf32, #tpu.memory_space<vmem>>, vector<1x4x256xf32>
    %122 = vector.shape_cast %121 : vector<1x4x256xf32> to vector<4x256xf32>
    %c0_i32_80 = arith.constant 0 : i32
    %123 = vector.broadcast %c0_i32_80 : i32 to vector<1x256xi32>
    %124 = arith.cmpi sgt, %18, %123 : vector<1x256xi32>
    %c0_i32_81 = arith.constant 0 : i32
    %125 = arith.sitofp %c0_i32_81 : i32 to f32
    %126 = vector.shape_cast %124 : vector<1x256xi1> to vector<1x256xi1>
    %127 = vector.broadcast %126 : vector<1x256xi1> to vector<4x256xi1>
    %128 = vector.broadcast %125 : f32 to vector<4x256xf32>
    %129 = arith.select %127, %122, %128 : vector<4x256xi1>, vector<4x256xf32>
    %c12_82 = arith.constant 12 : index
    %c256_83 = arith.constant 256 : index
    %130 = vector.load %arg6[%c12_82, %c256_83] : memref<36x512xf32, #tpu.memory_space<vmem>>, vector<4x256xf32>
    tpu.vector_store %arg6[%c12_82, %c256_83], %129 {strides = array<i32>} : memref<36x512xf32, #tpu.memory_space<vmem>>, vector<4x256xf32>,
    %c1_84 = arith.constant 1 : index
    %c0_85 = arith.constant 0 : index
    %c17_86 = arith.constant 17 : index
    %131 = vector.load %arg5[%c1_84, %c0_85, %c17_86] : memref<2x4x384xf32, #tpu.memory_space<vmem>>, vector<1x4x256xf32>
    %132 = vector.shape_cast %131 : vector<1x4x256xf32> to vector<4x256xf32>
    %c16_87 = arith.constant 16 : index
    %c256_88 = arith.constant 256 : index
    %133 = vector.load %arg6[%c16_87, %c256_88] : memref<36x512xf32, #tpu.memory_space<vmem>>, vector<4x256xf32>
    tpu.vector_store %arg6[%c16_87, %c256_88], %132 {strides = array<i32>} : memref<36x512xf32, #tpu.memory_space<vmem>>, vector<4x256xf32>,
    %c1_89 = arith.constant 1 : index
    %c0_90 = arith.constant 0 : index
    %c18_91 = arith.constant 18 : index
    %134 = vector.load %arg5[%c1_89, %c0_90, %c18_91] : memref<2x4x384xf32, #tpu.memory_space<vmem>>, vector<1x4x256xf32>
    %135 = vector.shape_cast %134 : vector<1x4x256xf32> to vector<4x256xf32>
    %c15_i32_92 = arith.constant 15 : i32
    %136 = vector.broadcast %c15_i32_92 : i32 to vector<1x256xi32>
    %137 = arith.cmpi slt, %18, %136 : vector<1x256xi32>
    %c0_i32_93 = arith.constant 0 : i32
    %138 = arith.sitofp %c0_i32_93 : i32 to f32
    %139 = vector.shape_cast %137 : vector<1x256xi1> to vector<1x256xi1>
    %140 = vector.broadcast %139 : vector<1x256xi1> to vector<4x256xi1>
    %141 = vector.broadcast %138 : f32 to vector<4x256xf32>
    %142 = arith.select %140, %135, %141 : vector<4x256xi1>, vector<4x256xf32>
    %c20_94 = arith.constant 20 : index
    %c256_95 = arith.constant 256 : index
    %143 = vector.load %arg6[%c20_94, %c256_95] : memref<36x512xf32, #tpu.memory_space<vmem>>, vector<4x256xf32>
    tpu.vector_store %arg6[%c20_94, %c256_95], %142 {strides = array<i32>} : memref<36x512xf32, #tpu.memory_space<vmem>>, vector<4x256xf32>,
    %c1_96 = arith.constant 1 : index
    %c0_97 = arith.constant 0 : index
    %c32_98 = arith.constant 32 : index
    %144 = vector.load %arg5[%c1_96, %c0_97, %c32_98] : memref<2x4x384xf32, #tpu.memory_space<vmem>>, vector<1x4x256xf32>
    %145 = vector.shape_cast %144 : vector<1x4x256xf32> to vector<4x256xf32>
    %c0_i32_99 = arith.constant 0 : i32
    %146 = vector.broadcast %c0_i32_99 : i32 to vector<1x256xi32>
    %147 = arith.cmpi sgt, %18, %146 : vector<1x256xi32>
    %c0_i32_100 = arith.constant 0 : i32
    %148 = arith.sitofp %c0_i32_100 : i32 to f32
    %149 = vector.shape_cast %147 : vector<1x256xi1> to vector<1x256xi1>
    %150 = vector.broadcast %149 : vector<1x256xi1> to vector<4x256xi1>
    %151 = vector.broadcast %148 : f32 to vector<4x256xf32>
    %152 = arith.select %150, %145, %151 : vector<4x256xi1>, vector<4x256xf32>
    %c24_101 = arith.constant 24 : index
    %c256_102 = arith.constant 256 : index
    %153 = vector.load %arg6[%c24_101, %c256_102] : memref<36x512xf32, #tpu.memory_space<vmem>>, vector<4x256xf32>
    tpu.vector_store %arg6[%c24_101, %c256_102], %152 {strides = array<i32>} : memref<36x512xf32, #tpu.memory_space<vmem>>, vector<4x256xf32>,
    %c1_103 = arith.constant 1 : index
    %c0_104 = arith.constant 0 : index
    %c33_105 = arith.constant 33 : index
    %154 = vector.load %arg5[%c1_103, %c0_104, %c33_105] : memref<2x4x384xf32, #tpu.memory_space<vmem>>, vector<1x4x256xf32>
    %155 = vector.shape_cast %154 : vector<1x4x256xf32> to vector<4x256xf32>
    %c28_106 = arith.constant 28 : index
    %c256_107 = arith.constant 256 : index
    %156 = vector.load %arg6[%c28_106, %c256_107] : memref<36x512xf32, #tpu.memory_space<vmem>>, vector<4x256xf32>
    tpu.vector_store %arg6[%c28_106, %c256_107], %155 {strides = array<i32>} : memref<36x512xf32, #tpu.memory_space<vmem>>, vector<4x256xf32>,
    %c1_108 = arith.constant 1 : index
    %c0_109 = arith.constant 0 : index
    %c34_110 = arith.constant 34 : index
    %157 = vector.load %arg5[%c1_108, %c0_109, %c34_110] : memref<2x4x384xf32, #tpu.memory_space<vmem>>, vector<1x4x256xf32>
    %158 = vector.shape_cast %157 : vector<1x4x256xf32> to vector<4x256xf32>
    %c15_i32_111 = arith.constant 15 : i32
    %159 = vector.broadcast %c15_i32_111 : i32 to vector<1x256xi32>
    %160 = arith.cmpi slt, %18, %159 : vector<1x256xi32>
    %c0_i32_112 = arith.constant 0 : i32
    %161 = arith.sitofp %c0_i32_112 : i32 to f32
    %162 = vector.shape_cast %160 : vector<1x256xi1> to vector<1x256xi1>
    %163 = vector.broadcast %162 : vector<1x256xi1> to vector<4x256xi1>
    %164 = vector.broadcast %161 : f32 to vector<4x256xf32>
    %165 = arith.select %163, %158, %164 : vector<4x256xi1>, vector<4x256xf32>
    %c32_113 = arith.constant 32 : index
    %c256_114 = arith.constant 256 : index
    %166 = vector.load %arg6[%c32_113, %c256_114] : memref<36x512xf32, #tpu.memory_space<vmem>>, vector<4x256xf32>
    tpu.vector_store %arg6[%c32_113, %c256_114], %165 {strides = array<i32>} : memref<36x512xf32, #tpu.memory_space<vmem>>, vector<4x256xf32>,
    %c0_115 = arith.constant 0 : index
    %c0_116 = arith.constant 0 : index
    %167 = vector.load %arg2[%c0_115, %c0_116] : memref<4x36xf32, #tpu.memory_space<vmem>>, vector<4x36xf32>
    %c0_117 = arith.constant 0 : index
    %c0_118 = arith.constant 0 : index
    %168 = vector.load %arg6[%c0_117, %c0_118] : memref<36x512xf32, #tpu.memory_space<vmem>>, vector<36x512xf32>
    %cst_119 = arith.constant dense<0.000000e+00> : vector<4x512xf32>
    %169 = tpu.matmul %167, %168, %cst_119 {dimension_numbers = #tpu.dot_dimension_numbers<[1], [0], [0], [1], [0, 0, 1, 1], [], []>} : vector<4x36xf32>, vector<36x512xf32>, vector<4x512xf32> -> vector<4x512xf32>
    %c0_120 = arith.constant 0 : index
    %c0_121 = arith.constant 0 : index
    %170 = vector.load %arg3[%c0_120, %c0_121] : memref<4x1xf32, #tpu.memory_space<vmem>>, vector<4x1xf32>
    %171 = vector.broadcast %170 : vector<4x1xf32> to vector<4x512xf32>
    %172 = arith.addf %169, %171 : vector<4x512xf32>
    %173 = vector.extract_strided_slice %172 {offsets = [0, 0], sizes = [4, 256], strides = [1, 1]} : vector<4x512xf32> to vector<4x256xf32>
    %c0_122 = arith.constant 0 : index
    %c0_123 = arith.constant 0 : index
    %c0_124 = arith.constant 0 : index
    %174 = vector.load %arg4[%c0_122, %c0_123, %c0_124] : memref<2x4x256xf32, #tpu.memory_space<vmem>>, vector<1x4x256xf32>
    %175 = vector.shape_cast %174 : vector<1x4x256xf32> to vector<4x256xf32>
    %176 = vector.shape_cast %173 : vector<4x256xf32> to vector<1x4x256xf32>
    tpu.vector_store %arg4[%c0_122, %c0_123, %c0_124], %176 {strides = array<i32>} : memref<2x4x256xf32, #tpu.memory_space<vmem>>, vector<1x4x256xf32>,
    %177 = vector.extract_strided_slice %172 {offsets = [0, 256], sizes = [4, 256], strides = [1, 1]} : vector<4x512xf32> to vector<4x256xf32>
    %c1_125 = arith.constant 1 : index
    %c0_126 = arith.constant 0 : index
    %c0_127 = arith.constant 0 : index
    %178 = vector.load %arg4[%c1_125, %c0_126, %c0_127] : memref<2x4x256xf32, #tpu.memory_space<vmem>>, vector<1x4x256xf32>
    %179 = vector.shape_cast %178 : vector<1x4x256xf32> to vector<4x256xf32>
    %180 = vector.shape_cast %177 : vector<4x256xf32> to vector<1x4x256xf32>
    tpu.vector_store %arg4[%c1_125, %c0_126, %c0_127], %180 {strides = array<i32>} : memref<2x4x256xf32, #tpu.memory_space<vmem>>, vector<1x4x256xf32>,
    return
  }
  func.func @transform_0(%arg0: i32) -> (i32, i32, i32) {
    %c0_i32 = arith.constant 0 : i32
    %c0_i32_0 = arith.constant 0 : i32
    %c0_i32_1 = arith.constant 0 : i32
    %c0_i32_2 = arith.constant 0 : i32
    return %c0_i32, %c0_i32_0, %c0_i32_1 : i32, i32, i32
  }
  func.func @transform_1(%arg0: i32) -> (i32, i32) {
    %c0_i32 = arith.constant 0 : i32
    %c0_i32_0 = arith.constant 0 : i32
    %c0_i32_1 = arith.constant 0 : i32
    return %c0_i32, %c0_i32_0 : i32, i32
  }
  func.func @transform_2(%arg0: i32) -> (i32, i32) {
    %c0_i32 = arith.constant 0 : i32
    %c0_i32_0 = arith.constant 0 : i32
    %c0_i32_1 = arith.constant 0 : i32
    return %c0_i32, %c0_i32_0 : i32, i32
  }
  func.func @transform_3(%arg0: i32) -> (i32, i32, i32) {
    %c0_i32 = arith.constant 0 : i32
    %c0_i32_0 = arith.constant 0 : i32
    %c0_i32_1 = arith.constant 0 : i32
    %c0_i32_2 = arith.constant 0 : i32
    return %c0_i32, %c0_i32_0, %c0_i32_1 : i32, i32, i32
  }
}

</mosaic_0001>

<llo_original>
// kernel: tpu_custom_call.1
$region0: #{tpu_custom_call.1}
  #allocation0 [shape = 'u32[]', space=smem, size = 0x4, offset = 0x4, fixed_abs, tag = 'smem constant byte address 0x4 - core index']
  #allocation1 [shape = 'u32[72,128]{1,0:T(1,128)}', space=vmem, size = 0x9000, scoped, tag = 'internal scratch']
  #allocation2 [shape = 'f32[2,4,384]{2,1,0:T(4,128)}', space=vmem, size = 0x3000, scoped, tag = 'scratch operand']
  #allocation3 [shape = 'f32[36,512]{1,0:T(8,128)}', space=vmem, size = 0x14000, scoped, tag = 'scratch operand']
  %s0 = inlined_call_operand.hbm [shape: f32[2,4,256], index: 0, kind: input, shape index: {}]
  %s1 = inlined_call_operand.vmem [shape: f32[4,36], index: 1, kind: input, shape index: {}]
  %s2 = inlined_call_operand.vmem [shape: f32[4,1], index: 2, kind: input, shape index: {}]
  %s3 = inlined_call_operand.hbm [shape: f32[2,4,256], index: 3, kind: output, shape index: {}]
  %s4 = sld [smem:[#allocation0]]
  $region26: #{tpu_custom_call.1} parent=0
    _
  %s6 = ssub.s32 1, %s4
  %s7 = scalar_select 0, %s6, %s4
  $region1: #{tpu_custom_call.1} parent=0
    #allocation4 [shape = 'u8[8192]{0}', space=vmem, size = 0x2000, scoped, tag = 'input window, operand 0, single buffered']
    #allocation5 [shape = 's32[1]{0}', space=sflag, size = 0x4, scoped, tag = 'scoped memory for tpu_custom_call.1']
    #allocation6 [shape = 's32[1]{0}', space=sflag, size = 0x4, scoped, tag = 'scoped memory for tpu_custom_call.1']
    #allocation7 [shape = 'u8[8192]{0}', space=vmem, size = 0x2000, scoped, tag = 'output window, operand 0, single buffered']
    %8 = vsyncpa [#allocation5], 0
    %9 = vsyncpa [#allocation6], 0
    // Predicated region
    $region2: #{tpu_custom_call.1} parent=1 // pred_check
      _
    $region3: #{tpu_custom_call.1} parent=1 // pred_check_branch
      %11 = sbr.rel (0) target = $region5
    $region4: #{tpu_custom_call.1} parent=1 // pred_region
      %13 = vsyncadd [#allocation5], 0
      %s14 = sshll.u32 %s0, 4
      %s15 = int_to_ptr.hbm [resolvable:$true] %s14
      %s16 = sshll.u32 [#allocation4], 4
      %s17 = int_to_ptr.vmem [resolvable:$true] %s16
      %22 = dma.hbm_to_vmem [thread:$0]  %s15, 256, %s17, [#allocation5], 128, 128, 8
    $region5: #{tpu_custom_call.1} parent=1 // pred_fallthru
      _
    // Predicated region
    $region6: #{tpu_custom_call.1} parent=1 // pred_check
      _
    $region7: #{tpu_custom_call.1} parent=1 // pred_check_branch
      %24 = sbr.rel (0) target = $region9
    $region8: #{tpu_custom_call.1} parent=1 // pred_region
      _
    $region9: #{tpu_custom_call.1} parent=1 // pred_fallthru
      _
    // Predicated region
    $region10: #{tpu_custom_call.1} parent=1 // pred_check
      _
    $region11: #{tpu_custom_call.1} parent=1 // pred_check_branch
      %26 = sbr.rel (0) target = $region13
    $region12: #{tpu_custom_call.1} parent=1 // pred_region
      _
    $region13: #{tpu_custom_call.1} parent=1 // pred_fallthru
      _
    // Predicated region
    $region14: #{tpu_custom_call.1} parent=1 // pred_check
      _
    $region15: #{tpu_custom_call.1} parent=1 // pred_check_branch
      %28 = sbr.rel (0) target = $region17
    $region16: #{tpu_custom_call.1} parent=1 // pred_region
      %30 = dma.done [#allocation5], 256
    $region17: #{tpu_custom_call.1} parent=1 // pred_fallthru
      _
    %31 = vst [vmem:[#allocation2] sm:$0xff] 0.0
    %32 = vst [vmem:[#allocation2 + $0x8] sm:$0xf] 0.0
    %33 = vst [vmem:[#allocation2 + $0xc] sm:$0xff] 0.0
    %34 = vst [vmem:[#allocation2 + $0x14] sm:$0xf] 0.0
    %v35 = vlaneseq
    %v36 = vand.u32 %v35, 127
    %v37 = vadd.s32 %v36, 128
    %vm38 = vcmp.lt.s32.totalorder %v36, 0
    %v39 = vsub.s32 0, %v36
    %v40 = vsel %vm38, %v39, %v36
    %v41 = vshrl.u32 %v40, 4
    %v42 = vand.u32 %v40, 15
    %v43 = vsub.s32 0, %v42
    %v44 = vsel %vm38, %v43, %v42
    %vm45 = vcmp.lt.s32.totalorder %v37, 0
    %v46 = vsub.s32 0, %v37
    %v47 = vsel %vm45, %v46, %v37
    %v48 = vshrl.u32 %v47, 4
    %v49 = vand.u32 %v47, 15
    %v50 = vsub.s32 0, %v49
    %v51 = vsel %vm45, %v50, %v49
    %vm52 = vcmp.ne.s32.totalorder %v44, 0
    %vm53 = vcmp.ne.s32.totalorder %v51, 0
    %vm54 = vcmp.lt.s32.totalorder %v44, 0
    %vm55 = vcmp.lt.s32.totalorder %v51, 0
    %vm56 = vmand %vm54, %vm52
    %vm57 = vmand %vm55, %vm53
    %v58 = vadd.s32 %v44, 16
    %v59 = vadd.s32 %v51, 16
    %v60 = vsel %vm56, %v58, %v44
    %v61 = vsel %vm57, %v59, %v51
    %v62 = vld [vmem:[#allocation4] sm:$0xff]
    %64 = vrot.lane.b32.xlu0 %v62, 17
    %v65 = vpop.permute.xlu0 %64
    %v66 = vrot.slane %v65, 4
    %vm67 = vcmask 138240
    %v68 = vsel %vm67, %v66, %v65
    %vm71 = vcmask 1043592
    %vm72 = vcmask 1047556
    %vm73 = vmor %vm72, %vm71
    %74 = vst.msk [vmem:[#allocation2] sm:$0xff] %vm73, %v68
    %vm75 = vcmask 134144
    %76 = vst.msk [vmem:[#allocation2 + $0x8] sm:$0xf] %vm75, %v66
    %v77 = vld [vmem:[#allocation2] sm:$0xff]
    %vm78 = vcmp.gt.s32.totalorder %v60, 0
    %vm79 = vcmp.gt.s32.totalorder %v61, 0
    %v80 = vsel %vm78, 1, 0
    %v81 = vsel %vm79, 1, 0
    %vm82 = vcmp.eq.s32.totalorder %v80, 1
    %vm83 = vcmp.eq.s32.totalorder %v81, 1
    %85 = vst [vmem:[#allocation1] ss:$2 sm:$0xff] %v77
    %v86 = vld.sshfl [vmem:[#allocation1] sm:$0xff pattern:$0x75316420]
    %v87 = vld.sshfl [vmem:[#allocation1 + $0x8] sm:$0xff pattern:$0x75316420]
    %v90 = vsel %vm82, %v86, 0.0
    %v91 = vsel %vm83, %v87, 0.0
    %92 = vst [vmem:[#allocation3] sm:$0xf] %v90
    %93 = vst [vmem:[#allocation3 + $0x8] sm:$0xf] %v91
    %v94 = vld [vmem:[#allocation2] sm:$0xff]
    %v95 = vld [vmem:[#allocation2 + $0x8] sm:$0xf]
    %s98 = scalar_lea.vmem [#allocation1], 1
    %99 = vst [vmem:[%s98] ss:$2 sm:$0xff] %v94
    %s100 = scalar_lea.vmem [#allocation1], 17
    %101 = vst [vmem:[%s100] ss:$2 sm:$0xff] %v95
    %v102 = vld.sshfl [vmem:[#allocation1] sm:$0xff pattern:$0x75316420]
    %v103 = vld.sshfl [vmem:[#allocation1 + $0x8] sm:$0xff pattern:$0x75316420]
    %v104 = vld.sshfl [vmem:[#allocation1 + $0x10] sm:$0xff pattern:$0x75316420]
    %105 = vrot.lane.b32.xlu0 %v102, 127
    %v106 = vpop.permute.xlu0 %105
    %107 = vrot.lane.b32.xlu0 %v103, 127
    %v108 = vpop.permute.xlu0 %107
    %109 = vrot.lane.b32.xlu0 %v104, 127
    %v110 = vpop.permute.xlu0 %109
    %vm111 = vcmask 1039360
    %v112 = vsel %vm111, %v106, %v108
    %v113 = vsel %vm111, %v108, %v110
    %116 = vst [vmem:[#allocation3] sm:$0xf0] %v112
    %117 = vst [vmem:[#allocation3 + $0x8] sm:$0xf0] %v113
    %v118 = vld [vmem:[#allocation2] sm:$0xff]
    %v119 = vld [vmem:[#allocation2 + $0x8] sm:$0xf]
    %vm120 = vcmp.lt.s32.totalorder %v60, 15
    %vm121 = vcmp.lt.s32.totalorder %v61, 15
    %v122 = vsel %vm120, 1, 0
    %v123 = vsel %vm121, 1, 0
    %vm124 = vcmp.eq.s32.totalorder %v122, 1
    %vm125 = vcmp.eq.s32.totalorder %v123, 1
    %128 = vst [vmem:[#allocation1] ss:$2 sm:$0xff] %v118
    %s129 = scalar_lea.vmem [#allocation1], 16
    %130 = vst [vmem:[%s129] ss:$2 sm:$0xff] %v119
    %v131 = vld.sshfl [vmem:[#allocation1] sm:$0xff pattern:$0x75316420]
    %v132 = vld.sshfl [vmem:[#allocation1 + $0x8] sm:$0xff pattern:$0x75316420]
    %v133 = vld.sshfl [vmem:[#allocation1 + $0x10] sm:$0xff pattern:$0x75316420]
    %134 = vrot.lane.b32.xlu0 %v131, 126
    %v135 = vpop.permute.xlu0 %134
    %136 = vrot.lane.b32.xlu0 %v132, 126
    %v137 = vpop.permute.xlu0 %136
    %138 = vrot.lane.b32.xlu0 %v133, 126
    %v139 = vpop.permute.xlu0 %138
    %vm140 = vcmask 1031168
    %v141 = vsel %vm140, %v135, %v137
    %v142 = vsel %vm140, %v137, %v139
    %v145 = vsel %vm124, %v141, 0.0
    %v146 = vsel %vm125, %v142, 0.0
    %147 = vst [vmem:[#allocation3 + $0x20] sm:$0xf] %v145
    %148 = vst [vmem:[#allocation3 + $0x28] sm:$0xf] %v146
    %v149 = vld [vmem:[#allocation2] sm:$0xff]
    %v150 = vld [vmem:[#allocation2 + $0x8] sm:$0xf]
    %153 = vst [vmem:[#allocation1] ss:$2 sm:$0xff] %v149
    %s154 = scalar_lea.vmem [#allocation1], 16
    %155 = vst [vmem:[%s154] ss:$2 sm:$0xff] %v150
    %v156 = vld.sshfl [vmem:[#allocation1] sm:$0xff pattern:$0x75316420]
    %v157 = vld.sshfl [vmem:[#allocation1 + $0x8] sm:$0xff pattern:$0x75316420]
    %v158 = vld.sshfl [vmem:[#allocation1 + $0x10] sm:$0xff pattern:$0x75316420]
    %159 = vrot.lane.b32.xlu0 %v156, 112
    %v160 = vpop.permute.xlu0 %159
    %161 = vrot.lane.b32.xlu0 %v157, 112
    %v162 = vpop.permute.xlu0 %161
    %163 = vrot.lane.b32.xlu0 %v158, 112
    %v164 = vpop.permute.xlu0 %163
    %vm165 = vcmask 916480
    %v166 = vsel %vm165, %v160, %v162
    %v167 = vsel %vm165, %v162, %v164
    %v170 = vsel %vm82, %v166, 0.0
    %v171 = vsel %vm83, %v167, 0.0
    %v174 = vrot.slane %v170, 4
    %v175 = vrot.slane %v171, 4
    %178 = vst [vmem:[#allocation3 + $0x20] sm:$0xf0] %v174
    %179 = vst [vmem:[#allocation3 + $0x28] sm:$0xf0] %v175
    %v180 = vld [vmem:[#allocation2] sm:$0xff]
    %v181 = vld [vmem:[#allocation2 + $0x8] sm:$0xf]
    %184 = vst [vmem:[#allocation1] ss:$2 sm:$0xff] %v180
    %s185 = scalar_lea.vmem [#allocation1], 16
    %186 = vst [vmem:[%s185] ss:$2 sm:$0xff] %v181
    %v187 = vld.sshfl [vmem:[#allocation1] sm:$0xff pattern:$0x75316420]
    %v188 = vld.sshfl [vmem:[#allocation1 + $0x8] sm:$0xff pattern:$0x75316420]
    %v189 = vld.sshfl [vmem:[#allocation1 + $0x10] sm:$0xff pattern:$0x75316420]
    %190 = vrot.lane.b32.xlu0 %v187, 111
    %v191 = vpop.permute.xlu0 %190
    %192 = vrot.lane.b32.xlu0 %v188, 111
    %v193 = vpop.permute.xlu0 %192
    %194 = vrot.lane.b32.xlu0 %v189, 111
    %v195 = vpop.permute.xlu0 %194
    %vm196 = vcmask 908288
    %v197 = vsel %vm196, %v191, %v193
    %v198 = vsel %vm196, %v193, %v195
    %201 = vst [vmem:[#allocation3 + $0x40] sm:$0xf] %v197
    %202 = vst [vmem:[#allocation3 + $0x48] sm:$0xf] %v198
    %v203 = vld [vmem:[#allocation2] sm:$0xff]
    %v204 = vld [vmem:[#allocation2 + $0x8] sm:$0xf]
    %207 = vst [vmem:[#allocation1] ss:$2 sm:$0xff] %v203
    %s208 = scalar_lea.vmem [#allocation1], 16
    %209 = vst [vmem:[%s208] ss:$2 sm:$0xff] %v204
    %v210 = vld.sshfl [vmem:[#allocation1] sm:$0xff pattern:$0x75316420]
    %v211 = vld.sshfl [vmem:[#allocation1 + $0x8] sm:$0xff pattern:$0x75316420]
    %v212 = vld.sshfl [vmem:[#allocation1 + $0x10] sm:$0xff pattern:$0x75316420]
    %213 = vrot.lane.b32.xlu0 %v210, 110
    %v214 = vpop.permute.xlu0 %213
    %215 = vrot.lane.b32.xlu0 %v211, 110
    %v216 = vpop.permute.xlu0 %215
    %217 = vrot.lane.b32.xlu0 %v212, 110
    %v218 = vpop.permute.xlu0 %217
    %vm219 = vcmask 900096
    %v220 = vsel %vm219, %v214, %v216
    %v221 = vsel %vm219, %v216, %v218
    %v224 = vsel %vm124, %v220, 0.0
    %v225 = vsel %vm125, %v221, 0.0
    %v228 = vrot.slane %v224, 4
    %v229 = vrot.slane %v225, 4
    %232 = vst [vmem:[#allocation3 + $0x40] sm:$0xf0] %v228
    %233 = vst [vmem:[#allocation3 + $0x48] sm:$0xf0] %v229
    %v234 = vld [vmem:[#allocation2] sm:$0xff]
    %v235 = vld [vmem:[#allocation2 + $0x8] sm:$0xf]
    %238 = vst [vmem:[#allocation1] ss:$2 sm:$0xff] %v234
    %s239 = scalar_lea.vmem [#allocation1], 16
    %240 = vst [vmem:[%s239] ss:$2 sm:$0xff] %v235
    %v241 = vld.sshfl [vmem:[#allocation1] sm:$0xff pattern:$0x75316420]
    %v242 = vld.sshfl [vmem:[#allocation1 + $0x8] sm:$0xff pattern:$0x75316420]
    %v243 = vld.sshfl [vmem:[#allocation1 + $0x10] sm:$0xff pattern:$0x75316420]
    %244 = vrot.lane.b32.xlu0 %v241, 96
    %v245 = vpop.permute.xlu0 %244
    %246 = vrot.lane.b32.xlu0 %v242, 96
    %v247 = vpop.permute.xlu0 %246
    %248 = vrot.lane.b32.xlu0 %v243, 96
    %v249 = vpop.permute.xlu0 %248
    %vm250 = vcmask 785408
    %v251 = vsel %vm250, %v245, %v247
    %v252 = vsel %vm250, %v247, %v249
    %v255 = vsel %vm82, %v251, 0.0
    %v256 = vsel %vm83, %v252, 0.0
    %257 = vst [vmem:[#allocation3 + $0x60] sm:$0xf] %v255
    %258 = vst [vmem:[#allocation3 + $0x68] sm:$0xf] %v256
    %v259 = vld [vmem:[#allocation2] sm:$0xff]
    %v260 = vld [vmem:[#allocation2 + $0x8] sm:$0xf]
    %s263 = scalar_lea.vmem [#allocation1], 1
    %264 = vst [vmem:[%s263] ss:$2 sm:$0xff] %v259
    %s265 = scalar_lea.vmem [#allocation1], 17
    %266 = vst [vmem:[%s265] ss:$2 sm:$0xff] %v260
    %v267 = vld.sshfl [vmem:[#allocation1] sm:$0xff pattern:$0x75316420]
    %v268 = vld.sshfl [vmem:[#allocation1 + $0x8] sm:$0xff pattern:$0x75316420]
    %v269 = vld.sshfl [vmem:[#allocation1 + $0x10] sm:$0xff pattern:$0x75316420]
    %270 = vrot.lane.b32.xlu0 %v267, 95
    %v271 = vpop.permute.xlu0 %270
    %272 = vrot.lane.b32.xlu0 %v268, 95
    %v273 = vpop.permute.xlu0 %272
    %274 = vrot.lane.b32.xlu0 %v269, 95
    %v275 = vpop.permute.xlu0 %274
    %vm276 = vcmask 777216
    %v277 = vsel %vm276, %v271, %v273
    %v278 = vsel %vm276, %v273, %v275
    %281 = vst [vmem:[#allocation3 + $0x60] sm:$0xf0] %v277
    %282 = vst [vmem:[#allocation3 + $0x68] sm:$0xf0] %v278
    %v283 = vld [vmem:[#allocation2] sm:$0xff]
    %v284 = vld [vmem:[#allocation2 + $0x8] sm:$0xf]
    %287 = vst [vmem:[#allocation1] ss:$2 sm:$0xff] %v283
    %s288 = scalar_lea.vmem [#allocation1], 16
    %289 = vst [vmem:[%s288] ss:$2 sm:$0xff] %v284
    %v290 = vld.sshfl [vmem:[#allocation1] sm:$0xff pattern:$0x75316420]
    %v291 = vld.sshfl [vmem:[#allocation1 + $0x8] sm:$0xff pattern:$0x75316420]
    %v292 = vld.sshfl [vmem:[#allocation1 + $0x10] sm:$0xff pattern:$0x75316420]
    %293 = vrot.lane.b32.xlu0 %v290, 94
    %v294 = vpop.permute.xlu0 %293
    %295 = vrot.lane.b32.xlu0 %v291, 94
    %v296 = vpop.permute.xlu0 %295
    %297 = vrot.lane.b32.xlu0 %v292, 94
    %v298 = vpop.permute.xlu0 %297
    %vm299 = vcmask 769024
    %v300 = vsel %vm299, %v294, %v296
    %v301 = vsel %vm299, %v296, %v298
    %v304 = vsel %vm124, %v300, 0.0
    %v305 = vsel %vm125, %v301, 0.0
    %306 = vst [vmem:[#allocation3 + $0x80] sm:$0xf] %v304
    %307 = vst [vmem:[#allocation3 + $0x88] sm:$0xf] %v305
    %s308 = scalar_lea.vmem [#allocation4], 8
    %v309 = vld [vmem:[%s308] sm:$0xff]
    %311 = vrot.lane.b32.xlu0 %v309, 17
    %v312 = vpop.permute.xlu0 %311
    %v313 = vrot.slane %v312, 4
    %v314 = vsel %vm67, %v313, %v312
    %s317 = scalar_lea.vmem [#allocation2], 12
    %318 = vst.msk [vmem:[%s317] sm:$0xff] %vm73, %v314
    %319 = vst.msk [vmem:[%s317 + $0x8] sm:$0xf] %vm75, %v313
    %v320 = vld [vmem:[%s317] sm:$0xff]
    %322 = vst [vmem:[#allocation1] ss:$2 sm:$0xff] %v320
    %v323 = vld.sshfl [vmem:[#allocation1] sm:$0xff pattern:$0x75316420]
    %v324 = vld.sshfl [vmem:[#allocation1 + $0x8] sm:$0xff pattern:$0x75316420]
    %v327 = vsel %vm82, %v323, 0.0
    %v328 = vsel %vm83, %v324, 0.0
    %329 = vst [vmem:[#allocation3 + $0x10] sm:$0xf] %v327
    %330 = vst [vmem:[#allocation3 + $0x18] sm:$0xf] %v328
    %v331 = vld [vmem:[%s317] sm:$0xff]
    %v332 = vld [vmem:[%s317 + $0x8] sm:$0xf]
    %s335 = scalar_lea.vmem [#allocation1], 1
    %336 = vst [vmem:[%s335] ss:$2 sm:$0xff] %v331
    %s337 = scalar_lea.vmem [#allocation1], 17
    %338 = vst [vmem:[%s337] ss:$2 sm:$0xff] %v332
    %v339 = vld.sshfl [vmem:[#allocation1] sm:$0xff pattern:$0x75316420]
    %v340 = vld.sshfl [vmem:[#allocation1 + $0x8] sm:$0xff pattern:$0x75316420]
    %v341 = vld.sshfl [vmem:[#allocation1 + $0x10] sm:$0xff pattern:$0x75316420]
    %342 = vrot.lane.b32.xlu0 %v339, 127
    %v343 = vpop.permute.xlu0 %342
    %344 = vrot.lane.b32.xlu0 %v340, 127
    %v345 = vpop.permute.xlu0 %344
    %346 = vrot.lane.b32.xlu0 %v341, 127
    %v347 = vpop.permute.xlu0 %346
    %v348 = vsel %vm111, %v343, %v345
    %v349 = vsel %vm111, %v345, %v347
    %352 = vst [vmem:[#allocation3 + $0x10] sm:$0xf0] %v348
    %353 = vst [vmem:[#allocation3 + $0x18] sm:$0xf0] %v349
    %v354 = vld [vmem:[%s317] sm:$0xff]
    %v355 = vld [vmem:[%s317 + $0x8] sm:$0xf]
    %358 = vst [vmem:[#allocation1] ss:$2 sm:$0xff] %v354
    %s359 = scalar_lea.vmem [#allocation1], 16
    %360 = vst [vmem:[%s359] ss:$2 sm:$0xff] %v355
    %v361 = vld.sshfl [vmem:[#allocation1] sm:$0xff pattern:$0x75316420]
    %v362 = vld.sshfl [vmem:[#allocation1 + $0x8] sm:$0xff pattern:$0x75316420]
    %v363 = vld.sshfl [vmem:[#allocation1 + $0x10] sm:$0xff pattern:$0x75316420]
    %364 = vrot.lane.b32.xlu0 %v361, 126
    %v365 = vpop.permute.xlu0 %364
    %366 = vrot.lane.b32.xlu0 %v362, 126
    %v367 = vpop.permute.xlu0 %366
    %368 = vrot.lane.b32.xlu0 %v363, 126
    %v369 = vpop.permute.xlu0 %368
    %v370 = vsel %vm140, %v365, %v367
    %v371 = vsel %vm140, %v367, %v369
    %v374 = vsel %vm124, %v370, 0.0
    %v375 = vsel %vm125, %v371, 0.0
    %376 = vst [vmem:[#allocation3 + $0x30] sm:$0xf] %v374
    %377 = vst [vmem:[#allocation3 + $0x38] sm:$0xf] %v375
    %v378 = vld [vmem:[%s317] sm:$0xff]
    %v379 = vld [vmem:[%s317 + $0x8] sm:$0xf]
    %382 = vst [vmem:[#allocation1] ss:$2 sm:$0xff] %v378
    %s383 = scalar_lea.vmem [#allocation1], 16
    %384 = vst [vmem:[%s383] ss:$2 sm:$0xff] %v379
    %v385 = vld.sshfl [vmem:[#allocation1] sm:$0xff pattern:$0x75316420]
    %v386 = vld.sshfl [vmem:[#allocation1 + $0x8] sm:$0xff pattern:$0x75316420]
    %v387 = vld.sshfl [vmem:[#allocation1 + $0x10] sm:$0xff pattern:$0x75316420]
    %388 = vrot.lane.b32.xlu0 %v385, 112
    %v389 = vpop.permute.xlu0 %388
    %390 = vrot.lane.b32.xlu0 %v386, 112
    %v391 = vpop.permute.xlu0 %390
    %392 = vrot.lane.b32.xlu0 %v387, 112
    %v393 = vpop.permute.xlu0 %392
    %v394 = vsel %vm165, %v389, %v391
    %v395 = vsel %vm165, %v391, %v393
    %v398 = vsel %vm82, %v394, 0.0
    %v399 = vsel %vm83, %v395, 0.0
    %v402 = vrot.slane %v398, 4
    %v403 = vrot.slane %v399, 4
    %406 = vst [vmem:[#allocation3 + $0x30] sm:$0xf0] %v402
    %407 = vst [vmem:[#allocation3 + $0x38] sm:$0xf0] %v403
    %v408 = vld [vmem:[%s317] sm:$0xff]
    %v409 = vld [vmem:[%s317 + $0x8] sm:$0xf]
    %412 = vst [vmem:[#allocation1] ss:$2 sm:$0xff] %v408
    %s413 = scalar_lea.vmem [#allocation1], 16
    %414 = vst [vmem:[%s413] ss:$2 sm:$0xff] %v409
    %v415 = vld.sshfl [vmem:[#allocation1] sm:$0xff pattern:$0x75316420]
    %v416 = vld.sshfl [vmem:[#allocation1 + $0x8] sm:$0xff pattern:$0x75316420]
    %v417 = vld.sshfl [vmem:[#allocation1 + $0x10] sm:$0xff pattern:$0x75316420]
    %418 = vrot.lane.b32.xlu0 %v415, 111
    %v419 = vpop.permute.xlu0 %418
    %420 = vrot.lane.b32.xlu0 %v416, 111
    %v421 = vpop.permute.xlu0 %420
    %422 = vrot.lane.b32.xlu0 %v417, 111
    %v423 = vpop.permute.xlu0 %422
    %v424 = vsel %vm196, %v419, %v421
    %v425 = vsel %vm196, %v421, %v423
    %428 = vst [vmem:[#allocation3 + $0x50] sm:$0xf] %v424
    %429 = vst [vmem:[#allocation3 + $0x58] sm:$0xf] %v425
    %v430 = vld [vmem:[%s317] sm:$0xff]
    %v431 = vld [vmem:[%s317 + $0x8] sm:$0xf]
    %434 = vst [vmem:[#allocation1] ss:$2 sm:$0xff] %v430
    %s435 = scalar_lea.vmem [#allocation1], 16
    %436 = vst [vmem:[%s435] ss:$2 sm:$0xff] %v431
    %v437 = vld.sshfl [vmem:[#allocation1] sm:$0xff pattern:$0x75316420]
    %v438 = vld.sshfl [vmem:[#allocation1 + $0x8] sm:$0xff pattern:$0x75316420]
    %v439 = vld.sshfl [vmem:[#allocation1 + $0x10] sm:$0xff pattern:$0x75316420]
    %440 = vrot.lane.b32.xlu0 %v437, 110
    %v441 = vpop.permute.xlu0 %440
    %442 = vrot.lane.b32.xlu0 %v438, 110
    %v443 = vpop.permute.xlu0 %442
    %444 = vrot.lane.b32.xlu0 %v439, 110
    %v445 = vpop.permute.xlu0 %444
    %v446 = vsel %vm219, %v441, %v443
    %v447 = vsel %vm219, %v443, %v445
    %v450 = vsel %vm124, %v446, 0.0
    %v451 = vsel %vm125, %v447, 0.0
    %v454 = vrot.slane %v450, 4
    %v455 = vrot.slane %v451, 4
    %458 = vst [vmem:[#allocation3 + $0x50] sm:$0xf0] %v454
    %459 = vst [vmem:[#allocation3 + $0x58] sm:$0xf0] %v455
    %v460 = vld [vmem:[%s317] sm:$0xff]
    %v461 = vld [vmem:[%s317 + $0x8] sm:$0xf]
    %464 = vst [vmem:[#allocation1] ss:$2 sm:$0xff] %v460
    %s465 = scalar_lea.vmem [#allocation1], 16
    %466 = vst [vmem:[%s465] ss:$2 sm:$0xff] %v461
    %v467 = vld.sshfl [vmem:[#allocation1] sm:$0xff pattern:$0x75316420]
    %v468 = vld.sshfl [vmem:[#allocation1 + $0x8] sm:$0xff pattern:$0x75316420]
    %v469 = vld.sshfl [vmem:[#allocation1 + $0x10] sm:$0xff pattern:$0x75316420]
    %470 = vrot.lane.b32.xlu0 %v467, 96
    %v471 = vpop.permute.xlu0 %470
    %472 = vrot.lane.b32.xlu0 %v468, 96
    %v473 = vpop.permute.xlu0 %472
    %474 = vrot.lane.b32.xlu0 %v469, 96
    %v475 = vpop.permute.xlu0 %474
    %v476 = vsel %vm250, %v471, %v473
    %v477 = vsel %vm250, %v473, %v475
    %v480 = vsel %vm82, %v476, 0.0
    %v481 = vsel %vm83, %v477, 0.0
    %482 = vst [vmem:[#allocation3 + $0x70] sm:$0xf] %v480
    %483 = vst [vmem:[#allocation3 + $0x78] sm:$0xf] %v481
    %v484 = vld [vmem:[%s317] sm:$0xff]
    %v485 = vld [vmem:[%s317 + $0x8] sm:$0xf]
    %s488 = scalar_lea.vmem [#allocation1], 1
    %489 = vst [vmem:[%s488] ss:$2 sm:$0xff] %v484
    %s490 = scalar_lea.vmem [#allocation1], 17
    %491 = vst [vmem:[%s490] ss:$2 sm:$0xff] %v485
    %v492 = vld.sshfl [vmem:[#allocation1] sm:$0xff pattern:$0x75316420]
    %v493 = vld.sshfl [vmem:[#allocation1 + $0x8] sm:$0xff pattern:$0x75316420]
    %v494 = vld.sshfl [vmem:[#allocation1 + $0x10] sm:$0xff pattern:$0x75316420]
    %495 = vrot.lane.b32.xlu0 %v492, 95
    %v496 = vpop.permute.xlu0 %495
    %497 = vrot.lane.b32.xlu0 %v493, 95
    %v498 = vpop.permute.xlu0 %497
    %499 = vrot.lane.b32.xlu0 %v494, 95
    %v500 = vpop.permute.xlu0 %499
    %v501 = vsel %vm276, %v496, %v498
    %v502 = vsel %vm276, %v498, %v500
    %505 = vst [vmem:[#allocation3 + $0x70] sm:$0xf0] %v501
    %506 = vst [vmem:[#allocation3 + $0x78] sm:$0xf0] %v502
    %v507 = vld [vmem:[%s317] sm:$0xff]
    %v508 = vld [vmem:[%s317 + $0x8] sm:$0xf]
    %511 = vst [vmem:[#allocation1] ss:$2 sm:$0xff] %v507
    %s512 = scalar_lea.vmem [#allocation1], 16
    %513 = vst [vmem:[%s512] ss:$2 sm:$0xff] %v508
    %v514 = vld.sshfl [vmem:[#allocation1] sm:$0xff pattern:$0x75316420]
    %v515 = vld.sshfl [vmem:[#allocation1 + $0x8] sm:$0xff pattern:$0x75316420]
    %v516 = vld.sshfl [vmem:[#allocation1 + $0x10] sm:$0xff pattern:$0x75316420]
    %517 = vrot.lane.b32.xlu0 %v514, 94
    %v518 = vpop.permute.xlu0 %517
    %519 = vrot.lane.b32.xlu0 %v515, 94
    %v520 = vpop.permute.xlu0 %519
    %521 = vrot.lane.b32.xlu0 %v516, 94
    %v522 = vpop.permute.xlu0 %521
    %v523 = vsel %vm299, %v518, %v520
    %v524 = vsel %vm299, %v520, %v522
    %v527 = vsel %vm124, %v523, 0.0
    %v528 = vsel %vm125, %v524, 0.0
    %529 = vst [vmem:[#allocation3 + $0x90] sm:$0xf] %v527
    %530 = vst [vmem:[#allocation3 + $0x98] sm:$0xf] %v528
    %v531 = vld [vmem:[%s1] sm:$0xf]
    %v532 = vld [vmem:[#allocation3] sm:$0xff]
    %v533 = vld [vmem:[#allocation3 + $0x8] sm:$0xff]
    %v534 = vld [vmem:[#allocation3 + $0x10] sm:$0xff]
    %v535 = vld [vmem:[#allocation3 + $0x18] sm:$0xff]
    %v536 = vld [vmem:[#allocation3 + $0x20] sm:$0xff]
    %v537 = vld [vmem:[#allocation3 + $0x28] sm:$0xff]
    %v538 = vld [vmem:[#allocation3 + $0x30] sm:$0xff]
    %v539 = vld [vmem:[#allocation3 + $0x38] sm:$0xff]
    %v540 = vld [vmem:[#allocation3 + $0x40] sm:$0xff]
    %v541 = vld [vmem:[#allocation3 + $0x48] sm:$0xff]
    %v542 = vld [vmem:[#allocation3 + $0x50] sm:$0xff]
    %v543 = vld [vmem:[#allocation3 + $0x58] sm:$0xff]
    %v544 = vld [vmem:[#allocation3 + $0x60] sm:$0xff]
    %v545 = vld [vmem:[#allocation3 + $0x68] sm:$0xff]
    %v546 = vld [vmem:[#allocation3 + $0x70] sm:$0xff]
    %v547 = vld [vmem:[#allocation3 + $0x78] sm:$0xff]
    %v548 = vld [vmem:[#allocation3 + $0x80] sm:$0xf]
    %v549 = vld [vmem:[#allocation3 + $0x88] sm:$0xf]
    %v550 = vld [vmem:[#allocation3 + $0x90] sm:$0xf]
    %v551 = vld [vmem:[#allocation3 + $0x98] sm:$0xf]
    %v552 = vld [vmem:[%s2] sm:$0xf]
    %554 = vset.pattern.permute.xlu0 0
    %555 = vperm.xlu0 %554, %v552
    %v556 = vpop.permute.xlu0 %555
    %vm558 = vcmask 293888
    %v560 = vsel %vm558, %v531, 0
    %vm562 = vcmask 1043456
    %v564 = vsel %vm562, %v548, 0
    %v567 = vsel %vm562, %v549, 0
    %v570 = vsel %vm562, %v550, 0
    %v573 = vsel %vm562, %v551, 0
    %575 = vmatpush.msra.mxu0 0.0
    %576 = vmatpush.msra.mxu0 0.0
    %577 = vmatpush.msra.mxu0 0.0
    %578 = vmatpush.msra.mxu0 0.0
    %579 = vmatpush.msra.mxu0 0.0
    %580 = vmatpush.msra.mxu0 0.0
    %581 = vmatpush.msra.mxu0 0.0
    %582 = vmatpush.msra.mxu0 0.0
    %583 = vmatpush.msra.mxu0 0.0
    %584 = vmatpush.msra.mxu0 0.0
    %585 = vmatpush.msra.mxu0 0.0
    %586 = vmatpush.msra.mxu0 %v564
    %587 = vmatpush.msra.mxu0 %v544
    %588 = vmatpush.msra.mxu0 %v540
    %589 = vmatpush.msra.mxu0 %v536
    %590 = vmatpush.msra.mxu0 %v532
    %591 = vmatmul.f32.gmra.mxu0 %v560
    %v592 = vpop.f32.mrf.mxu0
    %v593 = vadd.f32 %v556, %v592
    %594 = vdwg.mxu0
    %595 = vmatpush.msra.mxu0 0.0
    %596 = vmatpush.msra.mxu0 0.0
    %597 = vmatpush.msra.mxu0 0.0
    %598 = vmatpush.msra.mxu0 0.0
    %599 = vmatpush.msra.mxu0 0.0
    %600 = vmatpush.msra.mxu0 0.0
    %601 = vmatpush.msra.mxu0 0.0
    %602 = vmatpush.msra.mxu0 0.0
    %603 = vmatpush.msra.mxu0 0.0
    %604 = vmatpush.msra.mxu0 0.0
    %605 = vmatpush.msra.mxu0 0.0
    %606 = vmatpush.msra.mxu0 %v567
    %607 = vmatpush.msra.mxu0 %v545
    %608 = vmatpush.msra.mxu0 %v541
    %609 = vmatpush.msra.mxu0 %v537
    %610 = vmatpush.msra.mxu0 %v533
    %611 = vmatmul.f32.gmra.mxu0 %v560
    %v612 = vpop.f32.mrf.mxu0
    %v613 = vadd.f32 %v556, %v612
    %614 = vdwg.mxu0
    %615 = vmatpush.msra.mxu0 0.0
    %616 = vmatpush.msra.mxu0 0.0
    %617 = vmatpush.msra.mxu0 0.0
    %618 = vmatpush.msra.mxu0 0.0
    %619 = vmatpush.msra.mxu0 0.0
    %620 = vmatpush.msra.mxu0 0.0
    %621 = vmatpush.msra.mxu0 0.0
    %622 = vmatpush.msra.mxu0 0.0
    %623 = vmatpush.msra.mxu0 0.0
    %624 = vmatpush.msra.mxu0 0.0
    %625 = vmatpush.msra.mxu0 0.0
    %626 = vmatpush.msra.mxu0 %v570
    %627 = vmatpush.msra.mxu0 %v546
    %628 = vmatpush.msra.mxu0 %v542
    %629 = vmatpush.msra.mxu0 %v538
    %630 = vmatpush.msra.mxu0 %v534
    %631 = vmatmul.f32.gmra.mxu0 %v560
    %v632 = vpop.f32.mrf.mxu0
    %v633 = vadd.f32 %v556, %v632
    %634 = vdwg.mxu0
    %635 = vmatpush.msra.mxu0 0.0
    %636 = vmatpush.msra.mxu0 0.0
    %637 = vmatpush.msra.mxu0 0.0
    %638 = vmatpush.msra.mxu0 0.0
    %639 = vmatpush.msra.mxu0 0.0
    %640 = vmatpush.msra.mxu0 0.0
    %641 = vmatpush.msra.mxu0 0.0
    %642 = vmatpush.msra.mxu0 0.0
    %643 = vmatpush.msra.mxu0 0.0
    %644 = vmatpush.msra.mxu0 0.0
    %645 = vmatpush.msra.mxu0 0.0
    %646 = vmatpush.msra.mxu0 %v573
    %647 = vmatpush.msra.mxu0 %v547
    %648 = vmatpush.msra.mxu0 %v543
    %649 = vmatpush.msra.mxu0 %v539
    %650 = vmatpush.msra.mxu0 %v535
    %651 = vmatmul.f32.gmra.mxu0 %v560
    %v652 = vpop.f32.mrf.mxu0
    %v653 = vadd.f32 %v556, %v652
    %654 = vdwg.mxu0
    %v657 = vrot.slane %v613, 4
    %v658 = vsel %vm562, %v593, %v657
    %660 = vst [vmem:[#allocation7] sm:$0xff] %v658
    %v663 = vrot.slane %v653, 4
    %v664 = vsel %vm562, %v633, %v663
    %s666 = scalar_lea.vmem [#allocation7], 8
    %667 = vst [vmem:[%s666] sm:$0xff] %v664
    // Predicated region
    $region18: #{tpu_custom_call.1} parent=1 // pred_check
      _
    $region19: #{tpu_custom_call.1} parent=1 // pred_check_branch
      %669 = sbr.rel (0) target = $region21
    $region20: #{tpu_custom_call.1} parent=1 // pred_region
      %671 = vsyncadd [#allocation6], 0
      %s672 = sshll.u32 [#allocation7], 4
      %s673 = int_to_ptr.vmem [resolvable:$true] %s672
      %s674 = sshll.u32 %s3, 4
      %s675 = int_to_ptr.hbm [resolvable:$true] %s674
      %680 = dma.vmem_to_hbm [thread:$0]  %s673, 256, %s675, [#allocation6], 128, 128, 8
    $region21: #{tpu_custom_call.1} parent=1 // pred_fallthru
      _
    // Predicated region
    $region22: #{tpu_custom_call.1} parent=1 // pred_check
      _
    $region23: #{tpu_custom_call.1} parent=1 // pred_check_branch
      %682 = sbr.rel (0) target = $region25
    $region24: #{tpu_custom_call.1} parent=1 // pred_region
      %684 = dma.done [#allocation6], 256
    $region25: #{tpu_custom_call.1} parent=1 // pred_fallthru
      _
    %685 = vsyncpa [#allocation5], 1
    %686 = vsyncpa [#allocation6], 1

</llo_original>
